<compile_context>
chip_gen: v6e
topology: v6e:2x2x1
jax: 0.10.0
libtpu: 0.0.40
codegen_flags: <defaults>
</compile_context>

<pallas_src>
import jax
import jax.numpy as jnp
from jax.experimental import pallas as pl
from jax.experimental.pallas import tpu as pltpu


def _linear_hardswish_kernel(x_ref, wt_ref, b_ref, o_ref):
    # x_ref: (TM, K), wt_ref: (K, N), b_ref: (1, N), o_ref: (TM, N)
    acc = jnp.dot(x_ref[...], wt_ref[...],
                  preferred_element_type=jnp.float32) + b_ref[...]
    v2 = acc * jnp.clip(acc + 3.0, 0.0, 6.0)      # hardswish numerator (VPU)
    o_ref[...] = (v2 * (1.0 / 6.0)).astype(o_ref.dtype)


_MAX_TILE_M = 8192   # ~16 MiB double-buffered lane-padded footprint (x + out)
_SMALL_M = 1024      # below this: gridless, whole-array VMEM-resident path


def linear_hardswish(x, w_t, b2):
    """x: (M, K) f32; w_t: (K, N) f32 (weight transposed once at init);
    b2: (1, N) f32."""
    M, K = x.shape
    N = w_t.shape[1]
    out_shape = jax.ShapeDtypeStruct((M, N), jnp.float32)

    if M <= _SMALL_M:
        # Launch-overhead-bound; single invocation, no grid loop.
        return pl.pallas_call(
            _linear_hardswish_kernel,
            out_shape=out_shape,
            in_specs=[
                pl.BlockSpec(memory_space=pltpu.MemorySpace.VMEM),
                pl.BlockSpec(memory_space=pltpu.MemorySpace.VMEM),
                pl.BlockSpec(memory_space=pltpu.MemorySpace.VMEM),
            ],
            out_specs=pl.BlockSpec(memory_space=pltpu.MemorySpace.VMEM),
        )(x, w_t, b2)

    # Large-batch path: big M tiles to amortize the ~0.35 us per-step overhead,
    # clamped so the "parallel" axis keeps >=2 steps (v7x dual-TC sharding).
    half_m = pl.cdiv(M, 2)
    tile_m = min(_MAX_TILE_M, ((half_m + 7) // 8) * 8)
    grid_m = pl.cdiv(M, tile_m)

    return pl.pallas_call(
        _linear_hardswish_kernel,
        out_shape=out_shape,
        grid=(grid_m,),
        in_specs=[
            pl.BlockSpec((tile_m, K), lambda i: (i, 0)),
            pl.BlockSpec((K, N), lambda i: (0, 0)),
            pl.BlockSpec((1, N), lambda i: (0, 0)),
        ],
        out_specs=pl.BlockSpec((tile_m, N), lambda i: (i, 0)),
        compiler_params=pltpu.CompilerParams(
            dimension_semantics=("parallel",),
            vmem_limit_bytes=32 * 1024 * 1024,  # raise v5e's 16 MiB scoped default
        ),
    )(x, w_t, b2)


if __name__ == "__main__":
    key = jax.random.PRNGKey(0)
    kx, kw, kb = jax.random.split(key, 3)

    in_features, out_features = 3, 8
    batch = 1  # matches the PyTorch module spec: x2 = torch.randn(1, 3)

    x2 = jax.random.normal(kx, (batch, in_features), dtype=jnp.float32)
    weight = jax.random.normal(kw, (out_features, in_features), dtype=jnp.float32) * 0.5
    bias = jax.random.normal(kb, (out_features,), dtype=jnp.float32) * 0.1

    # One-time ("init") parameter layout: (K, N) weight and (1, N) bias so the
    # per-call graph contains no transpose and the kernel never transposes.
    w_t = jnp.asarray(weight.T)                          # (3, 8)
    b2 = jnp.asarray(bias.reshape(1, out_features))      # (1, 8)

    def ref_fn(x):
        v1 = x @ weight.T + bias
        return v1 * jnp.clip(v1 + 3.0, 0.0, 6.0) / 6.0

    # Module-sized run (M=1): gridless VMEM-resident path.
    out = jax.block_until_ready(linear_hardswish(x2, w_t, b2))
    assert out.shape == (batch, out_features)
    assert jnp.allclose(out, ref_fn(x2), atol=1e-5, rtol=1e-5)

    # Also exercise the tiled path: >=2 "parallel" grid steps + partial last tile.
    big_m = 5000
    xb = jax.random.normal(kx, (big_m, in_features), dtype=jnp.float32)
    outb = jax.block_until_ready(linear_hardswish(xb, w_t, b2))
    assert outb.shape == (big_m, out_features)
    assert jnp.allclose(outb, ref_fn(xb), atol=1e-5, rtol=1e-5)

    print("KERNEL_OK")
</pallas_src>

<mosaic_0001>
module attributes {stable_mosaic.version = 11 : i64} {
  func.func @_linear_hardswish_kernel(%arg0: memref<1x3xf32, #tpu.memory_space<vmem>>, %arg1: memref<3x8xf32, #tpu.memory_space<vmem>>, %arg2: memref<1x8xf32, #tpu.memory_space<vmem>>, %arg3: memref<1x8xf32, #tpu.memory_space<vmem>>) attributes {dimension_semantics = [], scalar_prefetch = 0 : i64, scratch_operands = 0 : i64, tpu.core_type = #tpu.core_type<tc>} {
    %c0 = arith.constant 0 : index
    %c0_0 = arith.constant 0 : index
    %0 = vector.load %arg0[%c0, %c0_0] : memref<1x3xf32, #tpu.memory_space<vmem>>, vector<1x3xf32>
    %c0_1 = arith.constant 0 : index
    %c0_2 = arith.constant 0 : index
    %1 = vector.load %arg1[%c0_1, %c0_2] : memref<3x8xf32, #tpu.memory_space<vmem>>, vector<3x8xf32>
    %cst = arith.constant dense<0.000000e+00> : vector<1x8xf32>
    %2 = tpu.matmul %0, %1, %cst {dimension_numbers = #tpu.dot_dimension_numbers<[1], [0], [0], [1], [0, 0, 1, 1], [], []>} : vector<1x3xf32>, vector<3x8xf32>, vector<1x8xf32> -> vector<1x8xf32>
    %c0_3 = arith.constant 0 : index
    %c0_4 = arith.constant 0 : index
    %3 = vector.load %arg2[%c0_3, %c0_4] : memref<1x8xf32, #tpu.memory_space<vmem>>, vector<1x8xf32>
    %4 = arith.addf %2, %3 : vector<1x8xf32>
    %cst_5 = arith.constant 3.000000e+00 : f32
    %5 = vector.broadcast %cst_5 : f32 to vector<1x8xf32>
    %6 = arith.addf %4, %5 : vector<1x8xf32>
    %cst_6 = arith.constant 0.000000e+00 : f32
    %cst_7 = arith.constant 6.000000e+00 : f32
    %7 = vector.broadcast %cst_6 : f32 to vector<1x8xf32>
    %8 = arith.maximumf %7, %6 : vector<1x8xf32>
    %9 = vector.broadcast %cst_7 : f32 to vector<1x8xf32>
    %10 = arith.minimumf %9, %8 : vector<1x8xf32>
    %11 = arith.mulf %4, %10 : vector<1x8xf32>
    %cst_8 = arith.constant 0.166666672 : f32
    %12 = vector.broadcast %cst_8 : f32 to vector<1x8xf32>
    %13 = arith.mulf %11, %12 : vector<1x8xf32>
    %c0_9 = arith.constant 0 : index
    %c0_10 = arith.constant 0 : index
    %14 = vector.load %arg3[%c0_9, %c0_10] : memref<1x8xf32, #tpu.memory_space<vmem>>, vector<1x8xf32>
    tpu.vector_store %arg3[%c0_9, %c0_10], %13 {strides = array<i32>} : memref<1x8xf32, #tpu.memory_space<vmem>>, vector<1x8xf32>,
    return
  }
}

</mosaic_0001>

<llo_original>
// kernel: tpu_custom_call.1
$region0: #{tpu_custom_call.1}
  #allocation0 [shape = 'u32[]', space=smem, size = 0x4, offset = 0x4, fixed_abs, tag = 'smem constant byte address 0x4 - core index']
  #allocation1 [shape = 'u32[144,128]{1,0:T(1,128)}', space=vmem, size = 0x12000, scoped, tag = 'internal scratch']
  %s0 = inlined_call_operand.hbm [shape: f32[1,3], index: 0, kind: input, shape index: {}]
  %s1 = inlined_call_operand.hbm [shape: f32[3,8], index: 1, kind: input, shape index: {}]
  %s2 = inlined_call_operand.vmem [shape: f32[1,8], index: 2, kind: input, shape index: {}]
  %s3 = inlined_call_operand.hbm [shape: f32[1,8], index: 3, kind: output, shape index: {}]
  %s4 = sld [smem:[#allocation0]]
  $region30: #{tpu_custom_call.1} parent=0
    _
  %s6 = ssub.s32 1, %s4
  %s7 = scalar_select 0, %s6, %s4
  $region1: #{tpu_custom_call.1} parent=0
    #allocation2 [shape = 'u8[512]{0}', space=vmem, size = 0x400, scoped, tag = 'input window, operand 0, single buffered']
    #allocation3 [shape = 's32[1]{0}', space=sflag, size = 0x4, scoped, tag = 'scoped memory for tpu_custom_call.1']
    #allocation4 [shape = 's32[1]{0}', space=sflag, size = 0x4, scoped, tag = 'scoped memory for tpu_custom_call.1']
    #allocation5 [shape = 'u8[2048]{0}', space=vmem, size = 0x800, scoped, tag = 'input window, operand 1, single buffered']
    #allocation6 [shape = 's32[1]{0}', space=sflag, size = 0x4, scoped, tag = 'scoped memory for tpu_custom_call.1']
    #allocation7 [shape = 'u8[512]{0}', space=vmem, size = 0x400, scoped, tag = 'output window, operand 0, single buffered']
    %8 = vsyncpa [#allocation3], 0
    %9 = vsyncpa [#allocation6], 0
    %10 = vsyncpa [#allocation4], 0
    // Predicated region
    $region2: #{tpu_custom_call.1} parent=1 // pred_check
      _
    $region3: #{tpu_custom_call.1} parent=1 // pred_check_branch
      %12 = sbr.rel (0) target = $region5
    $region4: #{tpu_custom_call.1} parent=1 // pred_region
      %s14 = ssub.s32 16, 16
      %15 = vsyncadd [#allocation3], %s14
      %s17 = sshll.u32 [#allocation2], 4
      %s18 = int_to_ptr.vmem [resolvable:$true] %s17
      %20 = dma.hbm_to_vmem [thread:$0]  %s0, 16, %s18, [#allocation3]
    $region5: #{tpu_custom_call.1} parent=1 // pred_fallthru
      _
    // Predicated region
    $region6: #{tpu_custom_call.1} parent=1 // pred_check
      _
    $region7: #{tpu_custom_call.1} parent=1 // pred_check_branch
      %22 = sbr.rel (0) target = $region9
    $region8: #{tpu_custom_call.1} parent=1 // pred_region
      %s24 = ssub.s32 64, 64
      %25 = vsyncadd [#allocation6], %s24
      %s27 = sshll.u32 [#allocation5], 4
      %s28 = int_to_ptr.vmem [resolvable:$true] %s27
      %30 = dma.hbm_to_vmem [thread:$0]  %s1, 64, %s28, [#allocation6]
    $region9: #{tpu_custom_call.1} parent=1 // pred_fallthru
      _
    // Predicated region
    $region10: #{tpu_custom_call.1} parent=1 // pred_check
      _
    $region11: #{tpu_custom_call.1} parent=1 // pred_check_branch
      %32 = sbr.rel (0) target = $region13
    $region12: #{tpu_custom_call.1} parent=1 // pred_region
      _
    $region13: #{tpu_custom_call.1} parent=1 // pred_fallthru
      _
    // Predicated region
    $region14: #{tpu_custom_call.1} parent=1 // pred_check
      _
    $region15: #{tpu_custom_call.1} parent=1 // pred_check_branch
      %34 = sbr.rel (0) target = $region17
    $region16: #{tpu_custom_call.1} parent=1 // pred_region
      %35 = dma.done [#allocation3], 16
    $region17: #{tpu_custom_call.1} parent=1 // pred_fallthru
      _
    // Predicated region
    $region18: #{tpu_custom_call.1} parent=1 // pred_check
      _
    $region19: #{tpu_custom_call.1} parent=1 // pred_check_branch
      %37 = sbr.rel (0) target = $region21
    $region20: #{tpu_custom_call.1} parent=1 // pred_region
      %38 = dma.done [#allocation6], 64
    $region21: #{tpu_custom_call.1} parent=1 // pred_fallthru
      _
    %v39 = vld [vmem:[#allocation2] sm:$0x1]
    %v40 = vld [vmem:[#allocation5] sm:$0x7]
    %v41 = vld [vmem:[%s2] sm:$0x1]
    %vm42 = vcmask 23552
    %v44 = vsel %vm42, %v39, 0
    %vm46 = vcmask 1042432
    %v48 = vsel %vm46, %v40, 0
    %50 = vmatprep.subr.mxu0 0.0
    %51 = vmatpush1.msra.mxu0 0.0
    %52 = vmatprep.subr.mxu0 0.0
    %53 = vmatpush1.msra.mxu0 0.0
    %54 = vmatprep.subr.mxu0 0.0
    %55 = vmatpush1.msra.mxu0 0.0
    %56 = vmatprep.subr.mxu0 0.0
    %57 = vmatpush1.msra.mxu0 0.0
    %58 = vmatprep.subr.mxu0 0.0
    %59 = vmatpush1.msra.mxu0 0.0
    %60 = vmatprep.subr.mxu0 0.0
    %61 = vmatpush1.msra.mxu0 0.0
    %62 = vmatprep.subr.mxu0 0.0
    %63 = vmatpush1.msra.mxu0 0.0
    %64 = vmatprep.subr.mxu0 0.0
    %65 = vmatpush1.msra.mxu0 0.0
    %66 = vmatprep.subr.mxu0 0.0
    %67 = vmatpush1.msra.mxu0 0.0
    %68 = vmatprep.subr.mxu0 0.0
    %69 = vmatpush1.msra.mxu0 0.0
    %70 = vmatprep.subr.mxu0 0.0
    %71 = vmatpush1.msra.mxu0 0.0
    %72 = vmatprep.subr.mxu0 0.0
    %73 = vmatpush1.msra.mxu0 0.0
    %74 = vmatprep.subr.mxu0 0.0
    %75 = vmatpush1.msra.mxu0 0.0
    %76 = vmatprep.subr.mxu0 0.0
    %77 = vmatpush1.msra.mxu0 0.0
    %78 = vmatprep.subr.mxu0 0.0
    %79 = vmatpush1.msra.mxu0 0.0
    %80 = vmatprep.subr.mxu0 0.0
    %81 = vmatpush1.msra.mxu0 %v48
    %82 = vmatprep.subr.mxu0 0.0
    %83 = vmatpush2.msra.mxu0 0.0
    %84 = vmatprep.subr.mxu0 0.0
    %85 = vmatpush2.msra.mxu0 0.0
    %86 = vmatprep.subr.mxu0 0.0
    %87 = vmatpush2.msra.mxu0 0.0
    %88 = vmatprep.subr.mxu0 0.0
    %89 = vmatpush2.msra.mxu0 0.0
    %90 = vmatprep.subr.mxu0 0.0
    %91 = vmatpush2.msra.mxu0 0.0
    %92 = vmatprep.subr.mxu0 0.0
    %93 = vmatpush2.msra.mxu0 0.0
    %94 = vmatprep.subr.mxu0 0.0
    %95 = vmatpush2.msra.mxu0 0.0
    %96 = vmatprep.subr.mxu0 0.0
    %97 = vmatpush2.msra.mxu0 0.0
    %98 = vmatprep.subr.mxu0 0.0
    %99 = vmatpush2.msra.mxu0 0.0
    %100 = vmatprep.subr.mxu0 0.0
    %101 = vmatpush2.msra.mxu0 0.0
    %102 = vmatprep.subr.mxu0 0.0
    %103 = vmatpush2.msra.mxu0 0.0
    %104 = vmatprep.subr.mxu0 0.0
    %105 = vmatpush2.msra.mxu0 0.0
    %106 = vmatprep.subr.mxu0 0.0
    %107 = vmatpush2.msra.mxu0 0.0
    %108 = vmatprep.subr.mxu0 0.0
    %109 = vmatpush2.msra.mxu0 0.0
    %110 = vmatprep.subr.mxu0 0.0
    %111 = vmatpush2.msra.mxu0 0.0
    %112 = vmatprep.subr.mxu0 0.0
    %113 = vmatpush2.msra.mxu0 0.0
    %114 = vmatprep.mubr.f32.mxu0 0.0
    %115 = vmatmul.mubr.f32.gmra.mxu0 %v44
    %v116 = vpop.f32.mrf.mxu0
    %v117 = vadd.f32 %v41, %v116
    %v118 = vpop.f32.mrf.mxu0
    %119 = vdwg.mxu0
    %v120 = vadd.f32 %v117, 3.0
    %v121 = vmax.f32 %v120, 0.0
    %v122 = vmin.f32 %v121, 6.0
    %v123 = vmul.f32 %v117, %v122
    %v124 = vmul.f32 %v123, 0.16666667
    %vm125 = vcmask 57344
    %126 = vst.msk [vmem:[#allocation7] sm:$0x1] %vm125, %v124
    // Predicated region
    $region22: #{tpu_custom_call.1} parent=1 // pred_check
      _
    $region23: #{tpu_custom_call.1} parent=1 // pred_check_branch
      %128 = sbr.rel (0) target = $region25
    $region24: #{tpu_custom_call.1} parent=1 // pred_region
      %s130 = ssub.s32 16, 16
      %131 = vsyncadd [#allocation4], %s130
      %s133 = sshll.u32 [#allocation7], 4
      %s134 = int_to_ptr.vmem [resolvable:$true] %s133
      %136 = dma.vmem_to_hbm [thread:$0]  %s134, 16, %s3, [#allocation4]
    $region25: #{tpu_custom_call.1} parent=1 // pred_fallthru
      _
    // Predicated region
    $region26: #{tpu_custom_call.1} parent=1 // pred_check
      _
    $region27: #{tpu_custom_call.1} parent=1 // pred_check_branch
      %138 = sbr.rel (0) target = $region29
    $region28: #{tpu_custom_call.1} parent=1 // pred_region
      %139 = dma.done [#allocation4], 16
    $region29: #{tpu_custom_call.1} parent=1 // pred_fallthru
      _
    %140 = vsyncpa [#allocation3], 1
    %141 = vsyncpa [#allocation6], 1
    %142 = vsyncpa [#allocation4], 1

</llo_original>
